<compile_context>
chip_gen: v7x
topology: tpu7x:2x2x1
jax: 0.10.0
libtpu: 0.0.40
codegen_flags: <defaults>
</compile_context>

<pallas_src>
import functools

import jax
import jax.numpy as jnp
from jax.experimental import pallas as pl
from jax.experimental.pallas import tpu as pltpu

_LANE = 128
_SUB = 8                       # sublanes per tile -> one full f32 vreg per plane
_CHUNK = _SUB * _LANE          # spatial lanes handled per grid step (1024)


def _round_up(x, m):
    return ((x + m - 1) // m) * m


def _sig(x):
    # sigmoid(x) == 0.5*tanh(0.5*x) + 0.5 : one EUP op (tanh) instead of exp+recip.
    return 0.5 * jnp.tanh(0.5 * x) + 0.5


def _select_by_head(t, tile_start, values):
    """Scalar select of a compile-time per-head constant by runtime tile index."""
    v = jnp.float32(values[0])
    for i in range(1, len(values)):
        v = jnp.where(t >= tile_start[i], jnp.float32(values[i]), v)
    return v


def _decode_fused_kernel(p_ref, o_ref, *, num_anchors, num_classes, tile_start,
                         widths, strides_w, strides_h, anchors_per_head):
    # p_ref: (A, 5+nc, SUB, 128)    o_ref: (A, 6, SUB, 128); batch dim squeezed.
    t = pl.program_id(1)
    nh = len(tile_start)

    # ---- per-tile scalars (scalar unit; head boundaries are compile-time) ----
    base = t * _CHUNK
    for i in range(1, nh):
        base = jnp.where(t >= tile_start[i], (t - tile_start[i]) * _CHUNK, base)
    w_f = _select_by_head(t, tile_start, [float(w) for w in widths])
    inv_w = _select_by_head(t, tile_start, [1.0 / float(w) for w in widths])
    sx = _select_by_head(t, tile_start, strides_w)
    sy = _select_by_head(t, tile_start, strides_h)

    # ---- grid coordinates, computed once per tile and shared across anchors ----
    row = jax.lax.broadcasted_iota(jnp.int32, (_SUB, _LANE), 0)
    lane = jax.lax.broadcasted_iota(jnp.int32, (_SUB, _LANE), 1)
    idx = (row * _LANE + lane + base).astype(jnp.float32)
    # Float floor trick (exact for YOLO head sizes; wrapper asserts HW < 2^22).
    gy = jnp.floor((idx + jnp.float32(0.5)) * inv_w)
    gx = idx - gy * w_f
    gxs = gx * sx
    gys = gy * sy

    for a in range(num_anchors):
        # scaled_anchor * stride == original anchor, so only the raw anchor is needed.
        aw = _select_by_head(t, tile_start,
                             [anchors_per_head[i][a][0] for i in range(nh)])
        ah = _select_by_head(t, tile_start,
                             [anchors_per_head[i][a][1] for i in range(nh)])

        tx = p_ref[a, 0]
        ty = p_ref[a, 1]
        tw = p_ref[a, 2]
        th = p_ref[a, 3]
        tc = p_ref[a, 4]

        o_ref[a, 0] = _sig(tx) * sx + gxs
        o_ref[a, 1] = _sig(ty) * sy + gys
        o_ref[a, 2] = jnp.exp(tw) * aw
        o_ref[a, 3] = jnp.exp(th) * ah
        o_ref[a, 4] = _sig(tc)

        # Class argmax on raw logits (monotone under sigmoid).  Two independent
        # running-max chains (ILP), merged with first-half priority so
        # ties-to-first matches argmax.  NOTE: differs from the reference only
        # if several logits are so large that sigmoid saturates to exactly 1.0.
        nc = num_classes
        if nc == 1:
            o_ref[a, 5] = jnp.zeros((_SUB, _LANE), jnp.float32)
        else:
            half = max(nc // 2, 1)

            def chain(lo, hi):
                bv = p_ref[a, 5 + lo]
                bi = jnp.full((_SUB, _LANE), jnp.float32(lo))
                for c in range(lo + 1, hi):
                    v = p_ref[a, 5 + c]
                    bi = jnp.where(v > bv, jnp.float32(c), bi)
                    bv = jnp.maximum(bv, v)
                return bv, bi

            v0, i0 = chain(0, half)
            v1, i1 = chain(half, nc)
            o_ref[a, 5] = jnp.where(v1 > v0, i1, i0)


def decode_yolov3_heads_pallas(preds, num_classes, anchors, input_size):
    """Fused decode of all YOLOv3 heads in a single pallas_call.

    preds: list of (B, A*(5+nc), H_i, W_i) arrays (NCHW, as in PyTorch).
    anchors: list of [w, h], 3 per head (same slicing order as the module).
    Returns (B, sum_i A*H_i*W_i, 6) float32: [cx, cy, w, h, conf, class_idx].
    """
    nh = len(preds)
    nc = num_classes
    B, C, _, _ = preds[0].shape
    A = C // (5 + nc)
    assert C == A * (5 + nc)
    assert len(anchors) >= nh * A

    slabs, widths, sws, shs, anch_per_head, head_meta, tile_start = [], [], [], [], [], [], []
    tiles = 0
    for i, pred in enumerate(preds):
        b, c, H, W = pred.shape
        assert b == B and c == C
        HW = H * W
        assert HW < (1 << 22), "float-floor grid trick requires HW < 2^22"
        pad_hw = _round_up(HW, _CHUNK)
        P = pad_hw // _LANE                              # 128-lane chunks (mult. of 8)
        # Channels-as-rows SoA slab: pure reshape of NCHW, no transpose.
        p = pred.astype(jnp.float32).reshape(B, A, 5 + nc, HW)
        p = jnp.pad(p, ((0, 0), (0, 0), (0, 0), (0, pad_hw - HW)))
        slabs.append(p.reshape(B, A, 5 + nc, P, _LANE))
        widths.append(W)
        sws.append(float(input_size) / W)
        shs.append(float(input_size) / H)
        anch_per_head.append(tuple((float(aw), float(ah))
                                   for aw, ah in anchors[A * i:A * i + A]))
        head_meta.append((HW, P))
        tile_start.append(tiles)
        tiles += P // _SUB

    fused = jnp.concatenate(slabs, axis=3)               # (B, A, 5+nc, P_total, 128)
    P_total = fused.shape[3]
    n_tiles = P_total // _SUB
    assert n_tiles == tiles

    kernel = functools.partial(
        _decode_fused_kernel, num_anchors=A, num_classes=nc,
        tile_start=tuple(tile_start), widths=tuple(widths),
        strides_w=tuple(sws), strides_h=tuple(shs),
        anchors_per_head=tuple(anch_per_head))

    lanes = P_total * _LANE
    cost = pl.CostEstimate(
        flops=int(B * A * lanes * (14 + 2 * nc)),
        transcendentals=int(B * A * lanes * 5),
        bytes_accessed=int(B * A * lanes * 4 * ((5 + nc) + 6)))

    out = pl.pallas_call(
        kernel,
        out_shape=jax.ShapeDtypeStruct((B, A, 6, P_total, _LANE), jnp.float32),
        grid=(B, n_tiles),
        in_specs=[pl.BlockSpec((None, A, 5 + nc, _SUB, _LANE),
                               lambda b, t: (b, 0, 0, t, 0))],
        out_specs=pl.BlockSpec((None, A, 6, _SUB, _LANE),
                               lambda b, t: (b, 0, 0, t, 0)),
        compiler_params=pltpu.CompilerParams(
            dimension_semantics=("parallel", "parallel")),
        cost_estimate=cost,
    )(fused)

    # Epilogue (small, 6-channel output only): drop lane padding and re-order to
    # the PyTorch (B, head -> anchor -> spatial, 6) AoS layout.
    pieces, start = [], 0
    for HW, P in head_meta:
        seg = out[:, :, :, start:start + P, :].reshape(B, A, 6, P * _LANE)[..., :HW]
        pieces.append(jnp.transpose(seg, (0, 1, 3, 2)).reshape(B, A * HW, 6))
        start += P
    return jnp.concatenate(pieces, axis=1)


def decode_predictions_ref(pred, num_classes, anchors, input_size):
    """Pure-JAX reference mirroring the PyTorch decode_predictions."""
    B, C, H, W = pred.shape
    A = len(anchors)
    nc = num_classes
    stride_h = float(input_size) / H
    stride_w = float(input_size) / W
    p = pred.reshape(B, A, 5 + nc, H, W).transpose(0, 1, 3, 4, 2).astype(jnp.float32)
    grid_x = jnp.arange(W, dtype=jnp.float32)[None, None, None, :, None]
    grid_y = jnp.arange(H, dtype=jnp.float32)[None, None, :, None, None]
    anc = jnp.asarray(anchors, dtype=jnp.float32)
    aw = (anc[:, 0] / stride_w)[None, :, None, None, None]
    ah = (anc[:, 1] / stride_h)[None, :, None, None, None]
    cx = (jax.nn.sigmoid(p[..., 0:1]) + grid_x) * stride_w
    cy = (jax.nn.sigmoid(p[..., 1:2]) + grid_y) * stride_h
    w = jnp.exp(p[..., 2:3]) * aw * stride_w
    h = jnp.exp(p[..., 3:4]) * ah * stride_h
    conf = jax.nn.sigmoid(p[..., 4:5])
    cls = jnp.argmax(jax.nn.sigmoid(p[..., 5:]), axis=-1, keepdims=True).astype(jnp.float32)
    out = jnp.concatenate([cx, cy, w, h, conf, cls], axis=-1)
    return out.reshape(B, A * H * W, 6)


class DecodeYoloV3:
    """Decode YOLOv3 head predictions to bounding boxes (Pallas-backed)."""

    def __init__(self, num_classes, anchors, input_size, conf_threshold=0.5):
        self.num_classes = num_classes
        self.anchors = anchors
        self.input_size = input_size
        self.conf_threshold = conf_threshold

    def __call__(self, x):
        assert x[0].shape[0] == 1
        decode_preds = decode_yolov3_heads_pallas(
            x, self.num_classes, self.anchors, self.input_size)
        # TODO(synk): nms_v3 is not defined in the provided source; returning the
        # decoded (un-suppressed) boxes (num_boxes, 6); conf_threshold unused.
        return decode_preds[0]


if __name__ == "__main__":
    num_classes = 4
    input_size = 64
    # 9 anchors, 3 per detection head, deterministic in-script values.
    anchors = [[4, 6], [8, 10], [12, 16],
               [16, 24], [24, 32], [32, 40],
               [40, 48], [48, 56], [56, 60]]
    A_per_head = 3
    chan = A_per_head * (5 + num_classes)   # 27

    key = jax.random.PRNGKey(0)
    k0, k1, k2 = jax.random.split(key, 3)
    x = [
        jax.random.normal(k0, (1, chan, 8, 8), dtype=jnp.float32),
        jax.random.normal(k1, (1, chan, 4, 4), dtype=jnp.float32),
        jax.random.normal(k2, (1, chan, 2, 2), dtype=jnp.float32),
    ]

    decoder = DecodeYoloV3(num_classes, anchors, input_size, conf_threshold=0.5)
    boxes = decoder(x)
    boxes = jax.block_until_ready(boxes)

    # sanity check against pure-JAX reference of decode_predictions
    refs = [decode_predictions_ref(x[i], num_classes, anchors[3 * i:3 * i + 3],
                                   input_size) for i in range(3)]
    ref = jnp.concatenate(refs, axis=1)[0]
    assert boxes.shape == ref.shape == (3 * (64 + 16 + 4), 6)
    assert jnp.allclose(boxes, ref, atol=1e-5, rtol=1e-5), "mismatch vs reference"

    print("KERNEL_OK")
</pallas_src>

<mosaic_0001>
module attributes {stable_mosaic.version = 11 : i64} {
  func.func @_decode_fused_kernel(%arg0: i32, %arg1: i32, %arg2: memref<1x3x9x8x128xf32, #tpu.memory_space<vmem>>, %arg3: memref<1x3x6x8x128xf32, #tpu.memory_space<vmem>>) attributes {dimension_semantics = [#tpu.dimension_semantics<parallel>, #tpu.dimension_semantics<parallel>], iteration_bounds = array<i64: 1, 3>, scalar_prefetch = 0 : i64, scratch_operands = 0 : i64, tpu.core_type = #tpu.core_type<tc>, window_params = [{transform_indices = @transform_0, window_bounds = array<i64: 1, 3, 9, 8, 128>}, {transform_indices = @transform_1, window_bounds = array<i64: 1, 3, 6, 8, 128>}]} {
    %c1024_i32 = arith.constant 1024 : i32
    %0 = arith.muli %arg1, %c1024_i32 : i32
    %c1_i32 = arith.constant 1 : i32
    %1 = arith.cmpi sge, %arg1, %c1_i32 : i32
    %c1_i32_0 = arith.constant 1 : i32
    %2 = arith.subi %arg1, %c1_i32_0 : i32
    %c1024_i32_1 = arith.constant 1024 : i32
    %3 = arith.muli %2, %c1024_i32_1 : i32
    %4 = arith.select %1, %3, %0 : i32
    %c2_i32 = arith.constant 2 : i32
    %5 = arith.cmpi sge, %arg1, %c2_i32 : i32
    %c2_i32_2 = arith.constant 2 : i32
    %6 = arith.subi %arg1, %c2_i32_2 : i32
    %c1024_i32_3 = arith.constant 1024 : i32
    %7 = arith.muli %6, %c1024_i32_3 : i32
    %8 = arith.select %5, %7, %4 : i32
    %c1_i32_4 = arith.constant 1 : i32
    %9 = arith.cmpi sge, %arg1, %c1_i32_4 : i32
    %cst = arith.constant 4.000000e+00 : f32
    %cst_5 = arith.constant 8.000000e+00 : f32
    %10 = arith.select %9, %cst, %cst_5 : f32
    %c2_i32_6 = arith.constant 2 : i32
    %11 = arith.cmpi sge, %arg1, %c2_i32_6 : i32
    %cst_7 = arith.constant 2.000000e+00 : f32
    %12 = arith.select %11, %cst_7, %10 : f32
    %c1_i32_8 = arith.constant 1 : i32
    %13 = arith.cmpi sge, %arg1, %c1_i32_8 : i32
    %cst_9 = arith.constant 2.500000e-01 : f32
    %cst_10 = arith.constant 1.250000e-01 : f32
    %14 = arith.select %13, %cst_9, %cst_10 : f32
    %c2_i32_11 = arith.constant 2 : i32
    %15 = arith.cmpi sge, %arg1, %c2_i32_11 : i32
    %cst_12 = arith.constant 5.000000e-01 : f32
    %16 = arith.select %15, %cst_12, %14 : f32
    %c1_i32_13 = arith.constant 1 : i32
    %17 = arith.cmpi sge, %arg1, %c1_i32_13 : i32
    %cst_14 = arith.constant 1.600000e+01 : f32
    %cst_15 = arith.constant 8.000000e+00 : f32
    %18 = arith.select %17, %cst_14, %cst_15 : f32
    %c2_i32_16 = arith.constant 2 : i32
    %19 = arith.cmpi sge, %arg1, %c2_i32_16 : i32
    %cst_17 = arith.constant 3.200000e+01 : f32
    %20 = arith.select %19, %cst_17, %18 : f32
    %c1_i32_18 = arith.constant 1 : i32
    %21 = arith.cmpi sge, %arg1, %c1_i32_18 : i32
    %cst_19 = arith.constant 1.600000e+01 : f32
    %cst_20 = arith.constant 8.000000e+00 : f32
    %22 = arith.select %21, %cst_19, %cst_20 : f32
    %c2_i32_21 = arith.constant 2 : i32
    %23 = arith.cmpi sge, %arg1, %c2_i32_21 : i32
    %cst_22 = arith.constant 3.200000e+01 : f32
    %24 = arith.select %23, %cst_22, %22 : f32
    %25 = tpu.iota {dimensions = array<i32: 0>} : vector<8x128xi32>
    %26 = tpu.iota {dimensions = array<i32: 1>} : vector<8x128xi32>
    %c128_i32 = arith.constant 128 : i32
    %27 = vector.broadcast %c128_i32 : i32 to vector<8x128xi32>
    %28 = arith.muli %25, %27 : vector<8x128xi32>
    %29 = arith.addi %28, %26 : vector<8x128xi32>
    %30 = vector.broadcast %8 : i32 to vector<8x128xi32>
    %31 = arith.addi %29, %30 : vector<8x128xi32>
    %32 = arith.sitofp %31 : vector<8x128xi32> to vector<8x128xf32>
    %cst_23 = arith.constant 5.000000e-01 : f32
    %33 = vector.broadcast %cst_23 : f32 to vector<8x128xf32>
    %34 = arith.addf %32, %33 : vector<8x128xf32>
    %35 = vector.broadcast %16 : f32 to vector<8x128xf32>
    %36 = arith.mulf %34, %35 : vector<8x128xf32>
    %37 = math.floor %36 : vector<8x128xf32>
    %38 = vector.broadcast %12 : f32 to vector<8x128xf32>
    %39 = arith.mulf %37, %38 : vector<8x128xf32>
    %40 = arith.subf %32, %39 : vector<8x128xf32>
    %41 = vector.broadcast %20 : f32 to vector<8x128xf32>
    %42 = arith.mulf %40, %41 : vector<8x128xf32>
    %43 = vector.broadcast %24 : f32 to vector<8x128xf32>
    %44 = arith.mulf %37, %43 : vector<8x128xf32>
    %c1_i32_24 = arith.constant 1 : i32
    %45 = arith.cmpi sge, %arg1, %c1_i32_24 : i32
    %cst_25 = arith.constant 1.600000e+01 : f32
    %cst_26 = arith.constant 4.000000e+00 : f32
    %46 = arith.select %45, %cst_25, %cst_26 : f32
    %c2_i32_27 = arith.constant 2 : i32
    %47 = arith.cmpi sge, %arg1, %c2_i32_27 : i32
    %cst_28 = arith.constant 4.000000e+01 : f32
    %48 = arith.select %47, %cst_28, %46 : f32
    %c1_i32_29 = arith.constant 1 : i32
    %49 = arith.cmpi sge, %arg1, %c1_i32_29 : i32
    %cst_30 = arith.constant 2.400000e+01 : f32
    %cst_31 = arith.constant 6.000000e+00 : f32
    %50 = arith.select %49, %cst_30, %cst_31 : f32
    %c2_i32_32 = arith.constant 2 : i32
    %51 = arith.cmpi sge, %arg1, %c2_i32_32 : i32
    %cst_33 = arith.constant 4.800000e+01 : f32
    %52 = arith.select %51, %cst_33, %50 : f32
    %c0 = arith.constant 0 : index
    %c0_34 = arith.constant 0 : index
    %c0_35 = arith.constant 0 : index
    %c0_36 = arith.constant 0 : index
    %c0_37 = arith.constant 0 : index
    %53 = vector.load %arg2[%c0, %c0_34, %c0_35, %c0_36, %c0_37] : memref<1x3x9x8x128xf32, #tpu.memory_space<vmem>>, vector<1x1x1x8x128xf32>
    %54 = vector.shape_cast %53 : vector<1x1x1x8x128xf32> to vector<8x128xf32>
    %c0_38 = arith.constant 0 : index
    %c0_39 = arith.constant 0 : index
    %c1 = arith.constant 1 : index
    %c0_40 = arith.constant 0 : index
    %c0_41 = arith.constant 0 : index
    %55 = vector.load %arg2[%c0_38, %c0_39, %c1, %c0_40, %c0_41] : memref<1x3x9x8x128xf32, #tpu.memory_space<vmem>>, vector<1x1x1x8x128xf32>
    %56 = vector.shape_cast %55 : vector<1x1x1x8x128xf32> to vector<8x128xf32>
    %c0_42 = arith.constant 0 : index
    %c0_43 = arith.constant 0 : index
    %c2 = arith.constant 2 : index
    %c0_44 = arith.constant 0 : index
    %c0_45 = arith.constant 0 : index
    %57 = vector.load %arg2[%c0_42, %c0_43, %c2, %c0_44, %c0_45] : memref<1x3x9x8x128xf32, #tpu.memory_space<vmem>>, vector<1x1x1x8x128xf32>
    %58 = vector.shape_cast %57 : vector<1x1x1x8x128xf32> to vector<8x128xf32>
    %c0_46 = arith.constant 0 : index
    %c0_47 = arith.constant 0 : index
    %c3 = arith.constant 3 : index
    %c0_48 = arith.constant 0 : index
    %c0_49 = arith.constant 0 : index
    %59 = vector.load %arg2[%c0_46, %c0_47, %c3, %c0_48, %c0_49] : memref<1x3x9x8x128xf32, #tpu.memory_space<vmem>>, vector<1x1x1x8x128xf32>
    %60 = vector.shape_cast %59 : vector<1x1x1x8x128xf32> to vector<8x128xf32>
    %c0_50 = arith.constant 0 : index
    %c0_51 = arith.constant 0 : index
    %c4 = arith.constant 4 : index
    %c0_52 = arith.constant 0 : index
    %c0_53 = arith.constant 0 : index
    %61 = vector.load %arg2[%c0_50, %c0_51, %c4, %c0_52, %c0_53] : memref<1x3x9x8x128xf32, #tpu.memory_space<vmem>>, vector<1x1x1x8x128xf32>
    %62 = vector.shape_cast %61 : vector<1x1x1x8x128xf32> to vector<8x128xf32>
    %cst_54 = arith.constant 5.000000e-01 : f32
    %63 = vector.broadcast %cst_54 : f32 to vector<8x128xf32>
    %64 = arith.mulf %63, %54 : vector<8x128xf32>
    %65 = math.tanh %64 : vector<8x128xf32>
    %cst_55 = arith.constant 5.000000e-01 : f32
    %66 = vector.broadcast %cst_55 : f32 to vector<8x128xf32>
    %67 = arith.mulf %66, %65 : vector<8x128xf32>
    %cst_56 = arith.constant 5.000000e-01 : f32
    %68 = vector.broadcast %cst_56 : f32 to vector<8x128xf32>
    %69 = arith.addf %67, %68 : vector<8x128xf32>
    %70 = vector.broadcast %20 : f32 to vector<8x128xf32>
    %71 = arith.mulf %69, %70 : vector<8x128xf32>
    %72 = arith.addf %71, %42 : vector<8x128xf32>
    %c0_57 = arith.constant 0 : index
    %c0_58 = arith.constant 0 : index
    %c0_59 = arith.constant 0 : index
    %c0_60 = arith.constant 0 : index
    %c0_61 = arith.constant 0 : index
    %73 = vector.load %arg3[%c0_57, %c0_58, %c0_59, %c0_60, %c0_61] : memref<1x3x6x8x128xf32, #tpu.memory_space<vmem>>, vector<1x1x1x8x128xf32>
    %74 = vector.shape_cast %73 : vector<1x1x1x8x128xf32> to vector<8x128xf32>
    %75 = vector.shape_cast %72 : vector<8x128xf32> to vector<1x1x1x8x128xf32>
    tpu.vector_store %arg3[%c0_57, %c0_58, %c0_59, %c0_60, %c0_61], %75 {strides = array<i32>} : memref<1x3x6x8x128xf32, #tpu.memory_space<vmem>>, vector<1x1x1x8x128xf32>,
    %cst_62 = arith.constant 5.000000e-01 : f32
    %76 = vector.broadcast %cst_62 : f32 to vector<8x128xf32>
    %77 = arith.mulf %76, %56 : vector<8x128xf32>
    %78 = math.tanh %77 : vector<8x128xf32>
    %cst_63 = arith.constant 5.000000e-01 : f32
    %79 = vector.broadcast %cst_63 : f32 to vector<8x128xf32>
    %80 = arith.mulf %79, %78 : vector<8x128xf32>
    %cst_64 = arith.constant 5.000000e-01 : f32
    %81 = vector.broadcast %cst_64 : f32 to vector<8x128xf32>
    %82 = arith.addf %80, %81 : vector<8x128xf32>
    %83 = vector.broadcast %24 : f32 to vector<8x128xf32>
    %84 = arith.mulf %82, %83 : vector<8x128xf32>
    %85 = arith.addf %84, %44 : vector<8x128xf32>
    %c0_65 = arith.constant 0 : index
    %c0_66 = arith.constant 0 : index
    %c1_67 = arith.constant 1 : index
    %c0_68 = arith.constant 0 : index
    %c0_69 = arith.constant 0 : index
    %86 = vector.load %arg3[%c0_65, %c0_66, %c1_67, %c0_68, %c0_69] : memref<1x3x6x8x128xf32, #tpu.memory_space<vmem>>, vector<1x1x1x8x128xf32>
    %87 = vector.shape_cast %86 : vector<1x1x1x8x128xf32> to vector<8x128xf32>
    %88 = vector.shape_cast %85 : vector<8x128xf32> to vector<1x1x1x8x128xf32>
    tpu.vector_store %arg3[%c0_65, %c0_66, %c1_67, %c0_68, %c0_69], %88 {strides = array<i32>} : memref<1x3x6x8x128xf32, #tpu.memory_space<vmem>>, vector<1x1x1x8x128xf32>,
    %89 = math.exp %58 : vector<8x128xf32>
    %90 = vector.broadcast %48 : f32 to vector<8x128xf32>
    %91 = arith.mulf %89, %90 : vector<8x128xf32>
    %c0_70 = arith.constant 0 : index
    %c0_71 = arith.constant 0 : index
    %c2_72 = arith.constant 2 : index
    %c0_73 = arith.constant 0 : index
    %c0_74 = arith.constant 0 : index
    %92 = vector.load %arg3[%c0_70, %c0_71, %c2_72, %c0_73, %c0_74] : memref<1x3x6x8x128xf32, #tpu.memory_space<vmem>>, vector<1x1x1x8x128xf32>
    %93 = vector.shape_cast %92 : vector<1x1x1x8x128xf32> to vector<8x128xf32>
    %94 = vector.shape_cast %91 : vector<8x128xf32> to vector<1x1x1x8x128xf32>
    tpu.vector_store %arg3[%c0_70, %c0_71, %c2_72, %c0_73, %c0_74], %94 {strides = array<i32>} : memref<1x3x6x8x128xf32, #tpu.memory_space<vmem>>, vector<1x1x1x8x128xf32>,
    %95 = math.exp %60 : vector<8x128xf32>
    %96 = vector.broadcast %52 : f32 to vector<8x128xf32>
    %97 = arith.mulf %95, %96 : vector<8x128xf32>
    %c0_75 = arith.constant 0 : index
    %c0_76 = arith.constant 0 : index
    %c3_77 = arith.constant 3 : index
    %c0_78 = arith.constant 0 : index
    %c0_79 = arith.constant 0 : index
    %98 = vector.load %arg3[%c0_75, %c0_76, %c3_77, %c0_78, %c0_79] : memref<1x3x6x8x128xf32, #tpu.memory_space<vmem>>, vector<1x1x1x8x128xf32>
    %99 = vector.shape_cast %98 : vector<1x1x1x8x128xf32> to vector<8x128xf32>
    %100 = vector.shape_cast %97 : vector<8x128xf32> to vector<1x1x1x8x128xf32>
    tpu.vector_store %arg3[%c0_75, %c0_76, %c3_77, %c0_78, %c0_79], %100 {strides = array<i32>} : memref<1x3x6x8x128xf32, #tpu.memory_space<vmem>>, vector<1x1x1x8x128xf32>,
    %cst_80 = arith.constant 5.000000e-01 : f32
    %101 = vector.broadcast %cst_80 : f32 to vector<8x128xf32>
    %102 = arith.mulf %101, %62 : vector<8x128xf32>
    %103 = math.tanh %102 : vector<8x128xf32>
    %cst_81 = arith.constant 5.000000e-01 : f32
    %104 = vector.broadcast %cst_81 : f32 to vector<8x128xf32>
    %105 = arith.mulf %104, %103 : vector<8x128xf32>
    %cst_82 = arith.constant 5.000000e-01 : f32
    %106 = vector.broadcast %cst_82 : f32 to vector<8x128xf32>
    %107 = arith.addf %105, %106 : vector<8x128xf32>
    %c0_83 = arith.constant 0 : index
    %c0_84 = arith.constant 0 : index
    %c4_85 = arith.constant 4 : index
    %c0_86 = arith.constant 0 : index
    %c0_87 = arith.constant 0 : index
    %108 = vector.load %arg3[%c0_83, %c0_84, %c4_85, %c0_86, %c0_87] : memref<1x3x6x8x128xf32, #tpu.memory_space<vmem>>, vector<1x1x1x8x128xf32>
    %109 = vector.shape_cast %108 : vector<1x1x1x8x128xf32> to vector<8x128xf32>
    %110 = vector.shape_cast %107 : vector<8x128xf32> to vector<1x1x1x8x128xf32>
    tpu.vector_store %arg3[%c0_83, %c0_84, %c4_85, %c0_86, %c0_87], %110 {strides = array<i32>} : memref<1x3x6x8x128xf32, #tpu.memory_space<vmem>>, vector<1x1x1x8x128xf32>,
    %c0_88 = arith.constant 0 : index
    %c0_89 = arith.constant 0 : index
    %c5 = arith.constant 5 : index
    %c0_90 = arith.constant 0 : index
    %c0_91 = arith.constant 0 : index
    %111 = vector.load %arg2[%c0_88, %c0_89, %c5, %c0_90, %c0_91] : memref<1x3x9x8x128xf32, #tpu.memory_space<vmem>>, vector<1x1x1x8x128xf32>
    %112 = vector.shape_cast %111 : vector<1x1x1x8x128xf32> to vector<8x128xf32>
    %cst_92 = arith.constant 0.000000e+00 : f32
    %113 = vector.broadcast %cst_92 : f32 to vector<8x128xf32>
    %c0_93 = arith.constant 0 : index
    %c0_94 = arith.constant 0 : index
    %c6 = arith.constant 6 : index
    %c0_95 = arith.constant 0 : index
    %c0_96 = arith.constant 0 : index
    %114 = vector.load %arg2[%c0_93, %c0_94, %c6, %c0_95, %c0_96] : memref<1x3x9x8x128xf32, #tpu.memory_space<vmem>>, vector<1x1x1x8x128xf32>
    %115 = vector.shape_cast %114 : vector<1x1x1x8x128xf32> to vector<8x128xf32>
    %116 = arith.cmpf ogt, %115, %112 : vector<8x128xf32>
    %cst_97 = arith.constant 1.000000e+00 : f32
    %117 = vector.broadcast %cst_97 : f32 to vector<8x128xf32>
    %118 = arith.select %116, %117, %113 : vector<8x128xi1>, vector<8x128xf32>
    %119 = arith.maximumf %112, %115 : vector<8x128xf32>
    %c0_98 = arith.constant 0 : index
    %c0_99 = arith.constant 0 : index
    %c7 = arith.constant 7 : index
    %c0_100 = arith.constant 0 : index
    %c0_101 = arith.constant 0 : index
    %120 = vector.load %arg2[%c0_98, %c0_99, %c7, %c0_100, %c0_101] : memref<1x3x9x8x128xf32, #tpu.memory_space<vmem>>, vector<1x1x1x8x128xf32>
    %121 = vector.shape_cast %120 : vector<1x1x1x8x128xf32> to vector<8x128xf32>
    %cst_102 = arith.constant 2.000000e+00 : f32
    %122 = vector.broadcast %cst_102 : f32 to vector<8x128xf32>
    %c0_103 = arith.constant 0 : index
    %c0_104 = arith.constant 0 : index
    %c8 = arith.constant 8 : index
    %c0_105 = arith.constant 0 : index
    %c0_106 = arith.constant 0 : index
    %123 = vector.load %arg2[%c0_103, %c0_104, %c8, %c0_105, %c0_106] : memref<1x3x9x8x128xf32, #tpu.memory_space<vmem>>, vector<1x1x1x8x128xf32>
    %124 = vector.shape_cast %123 : vector<1x1x1x8x128xf32> to vector<8x128xf32>
    %125 = arith.cmpf ogt, %124, %121 : vector<8x128xf32>
    %cst_107 = arith.constant 3.000000e+00 : f32
    %126 = vector.broadcast %cst_107 : f32 to vector<8x128xf32>
    %127 = arith.select %125, %126, %122 : vector<8x128xi1>, vector<8x128xf32>
    %128 = arith.maximumf %121, %124 : vector<8x128xf32>
    %129 = arith.cmpf ogt, %128, %119 : vector<8x128xf32>
    %130 = arith.select %129, %127, %118 : vector<8x128xi1>, vector<8x128xf32>
    %c0_108 = arith.constant 0 : index
    %c0_109 = arith.constant 0 : index
    %c5_110 = arith.constant 5 : index
    %c0_111 = arith.constant 0 : index
    %c0_112 = arith.constant 0 : index
    %131 = vector.load %arg3[%c0_108, %c0_109, %c5_110, %c0_111, %c0_112] : memref<1x3x6x8x128xf32, #tpu.memory_space<vmem>>, vector<1x1x1x8x128xf32>
    %132 = vector.shape_cast %131 : vector<1x1x1x8x128xf32> to vector<8x128xf32>
    %133 = vector.shape_cast %130 : vector<8x128xf32> to vector<1x1x1x8x128xf32>
    tpu.vector_store %arg3[%c0_108, %c0_109, %c5_110, %c0_111, %c0_112], %133 {strides = array<i32>} : memref<1x3x6x8x128xf32, #tpu.memory_space<vmem>>, vector<1x1x1x8x128xf32>,
    %c1_i32_113 = arith.constant 1 : i32
    %134 = arith.cmpi sge, %arg1, %c1_i32_113 : i32
    %cst_114 = arith.constant 2.400000e+01 : f32
    %cst_115 = arith.constant 8.000000e+00 : f32
    %135 = arith.select %134, %cst_114, %cst_115 : f32
    %c2_i32_116 = arith.constant 2 : i32
    %136 = arith.cmpi sge, %arg1, %c2_i32_116 : i32
    %cst_117 = arith.constant 4.800000e+01 : f32
    %137 = arith.select %136, %cst_117, %135 : f32
    %c1_i32_118 = arith.constant 1 : i32
    %138 = arith.cmpi sge, %arg1, %c1_i32_118 : i32
    %cst_119 = arith.constant 3.200000e+01 : f32
    %cst_120 = arith.constant 1.000000e+01 : f32
    %139 = arith.select %138, %cst_119, %cst_120 : f32
    %c2_i32_121 = arith.constant 2 : i32
    %140 = arith.cmpi sge, %arg1, %c2_i32_121 : i32
    %cst_122 = arith.constant 5.600000e+01 : f32
    %141 = arith.select %140, %cst_122, %139 : f32
    %c0_123 = arith.constant 0 : index
    %c1_124 = arith.constant 1 : index
    %c0_125 = arith.constant 0 : index
    %c0_126 = arith.constant 0 : index
    %c0_127 = arith.constant 0 : index
    %142 = vector.load %arg2[%c0_123, %c1_124, %c0_125, %c0_126, %c0_127] : memref<1x3x9x8x128xf32, #tpu.memory_space<vmem>>, vector<1x1x1x8x128xf32>
    %143 = vector.shape_cast %142 : vector<1x1x1x8x128xf32> to vector<8x128xf32>
    %c0_128 = arith.constant 0 : index
    %c1_129 = arith.constant 1 : index
    %c1_130 = arith.constant 1 : index
    %c0_131 = arith.constant 0 : index
    %c0_132 = arith.constant 0 : index
    %144 = vector.load %arg2[%c0_128, %c1_129, %c1_130, %c0_131, %c0_132] : memref<1x3x9x8x128xf32, #tpu.memory_space<vmem>>, vector<1x1x1x8x128xf32>
    %145 = vector.shape_cast %144 : vector<1x1x1x8x128xf32> to vector<8x128xf32>
    %c0_133 = arith.constant 0 : index
    %c1_134 = arith.constant 1 : index
    %c2_135 = arith.constant 2 : index
    %c0_136 = arith.constant 0 : index
    %c0_137 = arith.constant 0 : index
    %146 = vector.load %arg2[%c0_133, %c1_134, %c2_135, %c0_136, %c0_137] : memref<1x3x9x8x128xf32, #tpu.memory_space<vmem>>, vector<1x1x1x8x128xf32>
    %147 = vector.shape_cast %146 : vector<1x1x1x8x128xf32> to vector<8x128xf32>
    %c0_138 = arith.constant 0 : index
    %c1_139 = arith.constant 1 : index
    %c3_140 = arith.constant 3 : index
    %c0_141 = arith.constant 0 : index
    %c0_142 = arith.constant 0 : index
    %148 = vector.load %arg2[%c0_138, %c1_139, %c3_140, %c0_141, %c0_142] : memref<1x3x9x8x128xf32, #tpu.memory_space<vmem>>, vector<1x1x1x8x128xf32>
    %149 = vector.shape_cast %148 : vector<1x1x1x8x128xf32> to vector<8x128xf32>
    %c0_143 = arith.constant 0 : index
    %c1_144 = arith.constant 1 : index
    %c4_145 = arith.constant 4 : index
    %c0_146 = arith.constant 0 : index
    %c0_147 = arith.constant 0 : index
    %150 = vector.load %arg2[%c0_143, %c1_144, %c4_145, %c0_146, %c0_147] : memref<1x3x9x8x128xf32, #tpu.memory_space<vmem>>, vector<1x1x1x8x128xf32>
    %151 = vector.shape_cast %150 : vector<1x1x1x8x128xf32> to vector<8x128xf32>
    %cst_148 = arith.constant 5.000000e-01 : f32
    %152 = vector.broadcast %cst_148 : f32 to vector<8x128xf32>
    %153 = arith.mulf %152, %143 : vector<8x128xf32>
    %154 = math.tanh %153 : vector<8x128xf32>
    %cst_149 = arith.constant 5.000000e-01 : f32
    %155 = vector.broadcast %cst_149 : f32 to vector<8x128xf32>
    %156 = arith.mulf %155, %154 : vector<8x128xf32>
    %cst_150 = arith.constant 5.000000e-01 : f32
    %157 = vector.broadcast %cst_150 : f32 to vector<8x128xf32>
    %158 = arith.addf %156, %157 : vector<8x128xf32>
    %159 = vector.broadcast %20 : f32 to vector<8x128xf32>
    %160 = arith.mulf %158, %159 : vector<8x128xf32>
    %161 = arith.addf %160, %42 : vector<8x128xf32>
    %c0_151 = arith.constant 0 : index
    %c1_152 = arith.constant 1 : index
    %c0_153 = arith.constant 0 : index
    %c0_154 = arith.constant 0 : index
    %c0_155 = arith.constant 0 : index
    %162 = vector.load %arg3[%c0_151, %c1_152, %c0_153, %c0_154, %c0_155] : memref<1x3x6x8x128xf32, #tpu.memory_space<vmem>>, vector<1x1x1x8x128xf32>
    %163 = vector.shape_cast %162 : vector<1x1x1x8x128xf32> to vector<8x128xf32>
    %164 = vector.shape_cast %161 : vector<8x128xf32> to vector<1x1x1x8x128xf32>
    tpu.vector_store %arg3[%c0_151, %c1_152, %c0_153, %c0_154, %c0_155], %164 {strides = array<i32>} : memref<1x3x6x8x128xf32, #tpu.memory_space<vmem>>, vector<1x1x1x8x128xf32>,
    %cst_156 = arith.constant 5.000000e-01 : f32
    %165 = vector.broadcast %cst_156 : f32 to vector<8x128xf32>
    %166 = arith.mulf %165, %145 : vector<8x128xf32>
    %167 = math.tanh %166 : vector<8x128xf32>
    %cst_157 = arith.constant 5.000000e-01 : f32
    %168 = vector.broadcast %cst_157 : f32 to vector<8x128xf32>
    %169 = arith.mulf %168, %167 : vector<8x128xf32>
    %cst_158 = arith.constant 5.000000e-01 : f32
    %170 = vector.broadcast %cst_158 : f32 to vector<8x128xf32>
    %171 = arith.addf %169, %170 : vector<8x128xf32>
    %172 = vector.broadcast %24 : f32 to vector<8x128xf32>
    %173 = arith.mulf %171, %172 : vector<8x128xf32>
    %174 = arith.addf %173, %44 : vector<8x128xf32>
    %c0_159 = arith.constant 0 : index
    %c1_160 = arith.constant 1 : index
    %c1_161 = arith.constant 1 : index
    %c0_162 = arith.constant 0 : index
    %c0_163 = arith.constant 0 : index
    %175 = vector.load %arg3[%c0_159, %c1_160, %c1_161, %c0_162, %c0_163] : memref<1x3x6x8x128xf32, #tpu.memory_space<vmem>>, vector<1x1x1x8x128xf32>
    %176 = vector.shape_cast %175 : vector<1x1x1x8x128xf32> to vector<8x128xf32>
    %177 = vector.shape_cast %174 : vector<8x128xf32> to vector<1x1x1x8x128xf32>
    tpu.vector_store %arg3[%c0_159, %c1_160, %c1_161, %c0_162, %c0_163], %177 {strides = array<i32>} : memref<1x3x6x8x128xf32, #tpu.memory_space<vmem>>, vector<1x1x1x8x128xf32>,
    %178 = math.exp %147 : vector<8x128xf32>
    %179 = vector.broadcast %137 : f32 to vector<8x128xf32>
    %180 = arith.mulf %178, %179 : vector<8x128xf32>
    %c0_164 = arith.constant 0 : index
    %c1_165 = arith.constant 1 : index
    %c2_166 = arith.constant 2 : index
    %c0_167 = arith.constant 0 : index
    %c0_168 = arith.constant 0 : index
    %181 = vector.load %arg3[%c0_164, %c1_165, %c2_166, %c0_167, %c0_168] : memref<1x3x6x8x128xf32, #tpu.memory_space<vmem>>, vector<1x1x1x8x128xf32>
    %182 = vector.shape_cast %181 : vector<1x1x1x8x128xf32> to vector<8x128xf32>
    %183 = vector.shape_cast %180 : vector<8x128xf32> to vector<1x1x1x8x128xf32>
    tpu.vector_store %arg3[%c0_164, %c1_165, %c2_166, %c0_167, %c0_168], %183 {strides = array<i32>} : memref<1x3x6x8x128xf32, #tpu.memory_space<vmem>>, vector<1x1x1x8x128xf32>,
    %184 = math.exp %149 : vector<8x128xf32>
    %185 = vector.broadcast %141 : f32 to vector<8x128xf32>
    %186 = arith.mulf %184, %185 : vector<8x128xf32>
    %c0_169 = arith.constant 0 : index
    %c1_170 = arith.constant 1 : index
    %c3_171 = arith.constant 3 : index
    %c0_172 = arith.constant 0 : index
    %c0_173 = arith.constant 0 : index
    %187 = vector.load %arg3[%c0_169, %c1_170, %c3_171, %c0_172, %c0_173] : memref<1x3x6x8x128xf32, #tpu.memory_space<vmem>>, vector<1x1x1x8x128xf32>
    %188 = vector.shape_cast %187 : vector<1x1x1x8x128xf32> to vector<8x128xf32>
    %189 = vector.shape_cast %186 : vector<8x128xf32> to vector<1x1x1x8x128xf32>
    tpu.vector_store %arg3[%c0_169, %c1_170, %c3_171, %c0_172, %c0_173], %189 {strides = array<i32>} : memref<1x3x6x8x128xf32, #tpu.memory_space<vmem>>, vector<1x1x1x8x128xf32>,
    %cst_174 = arith.constant 5.000000e-01 : f32
    %190 = vector.broadcast %cst_174 : f32 to vector<8x128xf32>
    %191 = arith.mulf %190, %151 : vector<8x128xf32>
    %192 = math.tanh %191 : vector<8x128xf32>
    %cst_175 = arith.constant 5.000000e-01 : f32
    %193 = vector.broadcast %cst_175 : f32 to vector<8x128xf32>
    %194 = arith.mulf %193, %192 : vector<8x128xf32>
    %cst_176 = arith.constant 5.000000e-01 : f32
    %195 = vector.broadcast %cst_176 : f32 to vector<8x128xf32>
    %196 = arith.addf %194, %195 : vector<8x128xf32>
    %c0_177 = arith.constant 0 : index
    %c1_178 = arith.constant 1 : index
    %c4_179 = arith.constant 4 : index
    %c0_180 = arith.constant 0 : index
    %c0_181 = arith.constant 0 : index
    %197 = vector.load %arg3[%c0_177, %c1_178, %c4_179, %c0_180, %c0_181] : memref<1x3x6x8x128xf32, #tpu.memory_space<vmem>>, vector<1x1x1x8x128xf32>
    %198 = vector.shape_cast %197 : vector<1x1x1x8x128xf32> to vector<8x128xf32>
    %199 = vector.shape_cast %196 : vector<8x128xf32> to vector<1x1x1x8x128xf32>
    tpu.vector_store %arg3[%c0_177, %c1_178, %c4_179, %c0_180, %c0_181], %199 {strides = array<i32>} : memref<1x3x6x8x128xf32, #tpu.memory_space<vmem>>, vector<1x1x1x8x128xf32>,
    %c0_182 = arith.constant 0 : index
    %c1_183 = arith.constant 1 : index
    %c5_184 = arith.constant 5 : index
    %c0_185 = arith.constant 0 : index
    %c0_186 = arith.constant 0 : index
    %200 = vector.load %arg2[%c0_182, %c1_183, %c5_184, %c0_185, %c0_186] : memref<1x3x9x8x128xf32, #tpu.memory_space<vmem>>, vector<1x1x1x8x128xf32>
    %201 = vector.shape_cast %200 : vector<1x1x1x8x128xf32> to vector<8x128xf32>
    %cst_187 = arith.constant 0.000000e+00 : f32
    %202 = vector.broadcast %cst_187 : f32 to vector<8x128xf32>
    %c0_188 = arith.constant 0 : index
    %c1_189 = arith.constant 1 : index
    %c6_190 = arith.constant 6 : index
    %c0_191 = arith.constant 0 : index
    %c0_192 = arith.constant 0 : index
    %203 = vector.load %arg2[%c0_188, %c1_189, %c6_190, %c0_191, %c0_192] : memref<1x3x9x8x128xf32, #tpu.memory_space<vmem>>, vector<1x1x1x8x128xf32>
    %204 = vector.shape_cast %203 : vector<1x1x1x8x128xf32> to vector<8x128xf32>
    %205 = arith.cmpf ogt, %204, %201 : vector<8x128xf32>
    %cst_193 = arith.constant 1.000000e+00 : f32
    %206 = vector.broadcast %cst_193 : f32 to vector<8x128xf32>
    %207 = arith.select %205, %206, %202 : vector<8x128xi1>, vector<8x128xf32>
    %208 = arith.maximumf %201, %204 : vector<8x128xf32>
    %c0_194 = arith.constant 0 : index
    %c1_195 = arith.constant 1 : index
    %c7_196 = arith.constant 7 : index
    %c0_197 = arith.constant 0 : index
    %c0_198 = arith.constant 0 : index
    %209 = vector.load %arg2[%c0_194, %c1_195, %c7_196, %c0_197, %c0_198] : memref<1x3x9x8x128xf32, #tpu.memory_space<vmem>>, vector<1x1x1x8x128xf32>
    %210 = vector.shape_cast %209 : vector<1x1x1x8x128xf32> to vector<8x128xf32>
    %cst_199 = arith.constant 2.000000e+00 : f32
    %211 = vector.broadcast %cst_199 : f32 to vector<8x128xf32>
    %c0_200 = arith.constant 0 : index
    %c1_201 = arith.constant 1 : index
    %c8_202 = arith.constant 8 : index
    %c0_203 = arith.constant 0 : index
    %c0_204 = arith.constant 0 : index
    %212 = vector.load %arg2[%c0_200, %c1_201, %c8_202, %c0_203, %c0_204] : memref<1x3x9x8x128xf32, #tpu.memory_space<vmem>>, vector<1x1x1x8x128xf32>
    %213 = vector.shape_cast %212 : vector<1x1x1x8x128xf32> to vector<8x128xf32>
    %214 = arith.cmpf ogt, %213, %210 : vector<8x128xf32>
    %cst_205 = arith.constant 3.000000e+00 : f32
    %215 = vector.broadcast %cst_205 : f32 to vector<8x128xf32>
    %216 = arith.select %214, %215, %211 : vector<8x128xi1>, vector<8x128xf32>
    %217 = arith.maximumf %210, %213 : vector<8x128xf32>
    %218 = arith.cmpf ogt, %217, %208 : vector<8x128xf32>
    %219 = arith.select %218, %216, %207 : vector<8x128xi1>, vector<8x128xf32>
    %c0_206 = arith.constant 0 : index
    %c1_207 = arith.constant 1 : index
    %c5_208 = arith.constant 5 : index
    %c0_209 = arith.constant 0 : index
    %c0_210 = arith.constant 0 : index
    %220 = vector.load %arg3[%c0_206, %c1_207, %c5_208, %c0_209, %c0_210] : memref<1x3x6x8x128xf32, #tpu.memory_space<vmem>>, vector<1x1x1x8x128xf32>
    %221 = vector.shape_cast %220 : vector<1x1x1x8x128xf32> to vector<8x128xf32>
    %222 = vector.shape_cast %219 : vector<8x128xf32> to vector<1x1x1x8x128xf32>
    tpu.vector_store %arg3[%c0_206, %c1_207, %c5_208, %c0_209, %c0_210], %222 {strides = array<i32>} : memref<1x3x6x8x128xf32, #tpu.memory_space<vmem>>, vector<1x1x1x8x128xf32>,
    %c1_i32_211 = arith.constant 1 : i32
    %223 = arith.cmpi sge, %arg1, %c1_i32_211 : i32
    %cst_212 = arith.constant 3.200000e+01 : f32
    %cst_213 = arith.constant 1.200000e+01 : f32
    %224 = arith.select %223, %cst_212, %cst_213 : f32
    %c2_i32_214 = arith.constant 2 : i32
    %225 = arith.cmpi sge, %arg1, %c2_i32_214 : i32
    %cst_215 = arith.constant 5.600000e+01 : f32
    %226 = arith.select %225, %cst_215, %224 : f32
    %c1_i32_216 = arith.constant 1 : i32
    %227 = arith.cmpi sge, %arg1, %c1_i32_216 : i32
    %cst_217 = arith.constant 4.000000e+01 : f32
    %cst_218 = arith.constant 1.600000e+01 : f32
    %228 = arith.select %227, %cst_217, %cst_218 : f32
    %c2_i32_219 = arith.constant 2 : i32
    %229 = arith.cmpi sge, %arg1, %c2_i32_219 : i32
    %cst_220 = arith.constant 6.000000e+01 : f32
    %230 = arith.select %229, %cst_220, %228 : f32
    %c0_221 = arith.constant 0 : index
    %c2_222 = arith.constant 2 : index
    %c0_223 = arith.constant 0 : index
    %c0_224 = arith.constant 0 : index
    %c0_225 = arith.constant 0 : index
    %231 = vector.load %arg2[%c0_221, %c2_222, %c0_223, %c0_224, %c0_225] : memref<1x3x9x8x128xf32, #tpu.memory_space<vmem>>, vector<1x1x1x8x128xf32>
    %232 = vector.shape_cast %231 : vector<1x1x1x8x128xf32> to vector<8x128xf32>
    %c0_226 = arith.constant 0 : index
    %c2_227 = arith.constant 2 : index
    %c1_228 = arith.constant 1 : index
    %c0_229 = arith.constant 0 : index
    %c0_230 = arith.constant 0 : index
    %233 = vector.load %arg2[%c0_226, %c2_227, %c1_228, %c0_229, %c0_230] : memref<1x3x9x8x128xf32, #tpu.memory_space<vmem>>, vector<1x1x1x8x128xf32>
    %234 = vector.shape_cast %233 : vector<1x1x1x8x128xf32> to vector<8x128xf32>
    %c0_231 = arith.constant 0 : index
    %c2_232 = arith.constant 2 : index
    %c2_233 = arith.constant 2 : index
    %c0_234 = arith.constant 0 : index
    %c0_235 = arith.constant 0 : index
    %235 = vector.load %arg2[%c0_231, %c2_232, %c2_233, %c0_234, %c0_235] : memref<1x3x9x8x128xf32, #tpu.memory_space<vmem>>, vector<1x1x1x8x128xf32>
    %236 = vector.shape_cast %235 : vector<1x1x1x8x128xf32> to vector<8x128xf32>
    %c0_236 = arith.constant 0 : index
    %c2_237 = arith.constant 2 : index
    %c3_238 = arith.constant 3 : index
    %c0_239 = arith.constant 0 : index
    %c0_240 = arith.constant 0 : index
    %237 = vector.load %arg2[%c0_236, %c2_237, %c3_238, %c0_239, %c0_240] : memref<1x3x9x8x128xf32, #tpu.memory_space<vmem>>, vector<1x1x1x8x128xf32>
    %238 = vector.shape_cast %237 : vector<1x1x1x8x128xf32> to vector<8x128xf32>
    %c0_241 = arith.constant 0 : index
    %c2_242 = arith.constant 2 : index
    %c4_243 = arith.constant 4 : index
    %c0_244 = arith.constant 0 : index
    %c0_245 = arith.constant 0 : index
    %239 = vector.load %arg2[%c0_241, %c2_242, %c4_243, %c0_244, %c0_245] : memref<1x3x9x8x128xf32, #tpu.memory_space<vmem>>, vector<1x1x1x8x128xf32>
    %240 = vector.shape_cast %239 : vector<1x1x1x8x128xf32> to vector<8x128xf32>
    %cst_246 = arith.constant 5.000000e-01 : f32
    %241 = vector.broadcast %cst_246 : f32 to vector<8x128xf32>
    %242 = arith.mulf %241, %232 : vector<8x128xf32>
    %243 = math.tanh %242 : vector<8x128xf32>
    %cst_247 = arith.constant 5.000000e-01 : f32
    %244 = vector.broadcast %cst_247 : f32 to vector<8x128xf32>
    %245 = arith.mulf %244, %243 : vector<8x128xf32>
    %cst_248 = arith.constant 5.000000e-01 : f32
    %246 = vector.broadcast %cst_248 : f32 to vector<8x128xf32>
    %247 = arith.addf %245, %246 : vector<8x128xf32>
    %248 = vector.broadcast %20 : f32 to vector<8x128xf32>
    %249 = arith.mulf %247, %248 : vector<8x128xf32>
    %250 = arith.addf %249, %42 : vector<8x128xf32>
    %c0_249 = arith.constant 0 : index
    %c2_250 = arith.constant 2 : index
    %c0_251 = arith.constant 0 : index
    %c0_252 = arith.constant 0 : index
    %c0_253 = arith.constant 0 : index
    %251 = vector.load %arg3[%c0_249, %c2_250, %c0_251, %c0_252, %c0_253] : memref<1x3x6x8x128xf32, #tpu.memory_space<vmem>>, vector<1x1x1x8x128xf32>
    %252 = vector.shape_cast %251 : vector<1x1x1x8x128xf32> to vector<8x128xf32>
    %253 = vector.shape_cast %250 : vector<8x128xf32> to vector<1x1x1x8x128xf32>
    tpu.vector_store %arg3[%c0_249, %c2_250, %c0_251, %c0_252, %c0_253], %253 {strides = array<i32>} : memref<1x3x6x8x128xf32, #tpu.memory_space<vmem>>, vector<1x1x1x8x128xf32>,
    %cst_254 = arith.constant 5.000000e-01 : f32
    %254 = vector.broadcast %cst_254 : f32 to vector<8x128xf32>
    %255 = arith.mulf %254, %234 : vector<8x128xf32>
    %256 = math.tanh %255 : vector<8x128xf32>
    %cst_255 = arith.constant 5.000000e-01 : f32
    %257 = vector.broadcast %cst_255 : f32 to vector<8x128xf32>
    %258 = arith.mulf %257, %256 : vector<8x128xf32>
    %cst_256 = arith.constant 5.000000e-01 : f32
    %259 = vector.broadcast %cst_256 : f32 to vector<8x128xf32>
    %260 = arith.addf %258, %259 : vector<8x128xf32>
    %261 = vector.broadcast %24 : f32 to vector<8x128xf32>
    %262 = arith.mulf %260, %261 : vector<8x128xf32>
    %263 = arith.addf %262, %44 : vector<8x128xf32>
    %c0_257 = arith.constant 0 : index
    %c2_258 = arith.constant 2 : index
    %c1_259 = arith.constant 1 : index
    %c0_260 = arith.constant 0 : index
    %c0_261 = arith.constant 0 : index
    %264 = vector.load %arg3[%c0_257, %c2_258, %c1_259, %c0_260, %c0_261] : memref<1x3x6x8x128xf32, #tpu.memory_space<vmem>>, vector<1x1x1x8x128xf32>
    %265 = vector.shape_cast %264 : vector<1x1x1x8x128xf32> to vector<8x128xf32>
    %266 = vector.shape_cast %263 : vector<8x128xf32> to vector<1x1x1x8x128xf32>
    tpu.vector_store %arg3[%c0_257, %c2_258, %c1_259, %c0_260, %c0_261], %266 {strides = array<i32>} : memref<1x3x6x8x128xf32, #tpu.memory_space<vmem>>, vector<1x1x1x8x128xf32>,
    %267 = math.exp %236 : vector<8x128xf32>
    %268 = vector.broadcast %226 : f32 to vector<8x128xf32>
    %269 = arith.mulf %267, %268 : vector<8x128xf32>
    %c0_262 = arith.constant 0 : index
    %c2_263 = arith.constant 2 : index
    %c2_264 = arith.constant 2 : index
    %c0_265 = arith.constant 0 : index
    %c0_266 = arith.constant 0 : index
    %270 = vector.load %arg3[%c0_262, %c2_263, %c2_264, %c0_265, %c0_266] : memref<1x3x6x8x128xf32, #tpu.memory_space<vmem>>, vector<1x1x1x8x128xf32>
    %271 = vector.shape_cast %270 : vector<1x1x1x8x128xf32> to vector<8x128xf32>
    %272 = vector.shape_cast %269 : vector<8x128xf32> to vector<1x1x1x8x128xf32>
    tpu.vector_store %arg3[%c0_262, %c2_263, %c2_264, %c0_265, %c0_266], %272 {strides = array<i32>} : memref<1x3x6x8x128xf32, #tpu.memory_space<vmem>>, vector<1x1x1x8x128xf32>,
    %273 = math.exp %238 : vector<8x128xf32>
    %274 = vector.broadcast %230 : f32 to vector<8x128xf32>
    %275 = arith.mulf %273, %274 : vector<8x128xf32>
    %c0_267 = arith.constant 0 : index
    %c2_268 = arith.constant 2 : index
    %c3_269 = arith.constant 3 : index
    %c0_270 = arith.constant 0 : index
    %c0_271 = arith.constant 0 : index
    %276 = vector.load %arg3[%c0_267, %c2_268, %c3_269, %c0_270, %c0_271] : memref<1x3x6x8x128xf32, #tpu.memory_space<vmem>>, vector<1x1x1x8x128xf32>
    %277 = vector.shape_cast %276 : vector<1x1x1x8x128xf32> to vector<8x128xf32>
    %278 = vector.shape_cast %275 : vector<8x128xf32> to vector<1x1x1x8x128xf32>
    tpu.vector_store %arg3[%c0_267, %c2_268, %c3_269, %c0_270, %c0_271], %278 {strides = array<i32>} : memref<1x3x6x8x128xf32, #tpu.memory_space<vmem>>, vector<1x1x1x8x128xf32>,
    %cst_272 = arith.constant 5.000000e-01 : f32
    %279 = vector.broadcast %cst_272 : f32 to vector<8x128xf32>
    %280 = arith.mulf %279, %240 : vector<8x128xf32>
    %281 = math.tanh %280 : vector<8x128xf32>
    %cst_273 = arith.constant 5.000000e-01 : f32
    %282 = vector.broadcast %cst_273 : f32 to vector<8x128xf32>
    %283 = arith.mulf %282, %281 : vector<8x128xf32>
    %cst_274 = arith.constant 5.000000e-01 : f32
    %284 = vector.broadcast %cst_274 : f32 to vector<8x128xf32>
    %285 = arith.addf %283, %284 : vector<8x128xf32>
    %c0_275 = arith.constant 0 : index
    %c2_276 = arith.constant 2 : index
    %c4_277 = arith.constant 4 : index
    %c0_278 = arith.constant 0 : index
    %c0_279 = arith.constant 0 : index
    %286 = vector.load %arg3[%c0_275, %c2_276, %c4_277, %c0_278, %c0_279] : memref<1x3x6x8x128xf32, #tpu.memory_space<vmem>>, vector<1x1x1x8x128xf32>
    %287 = vector.shape_cast %286 : vector<1x1x1x8x128xf32> to vector<8x128xf32>
    %288 = vector.shape_cast %285 : vector<8x128xf32> to vector<1x1x1x8x128xf32>
    tpu.vector_store %arg3[%c0_275, %c2_276, %c4_277, %c0_278, %c0_279], %288 {strides = array<i32>} : memref<1x3x6x8x128xf32, #tpu.memory_space<vmem>>, vector<1x1x1x8x128xf32>,
    %c0_280 = arith.constant 0 : index
    %c2_281 = arith.constant 2 : index
    %c5_282 = arith.constant 5 : index
    %c0_283 = arith.constant 0 : index
    %c0_284 = arith.constant 0 : index
    %289 = vector.load %arg2[%c0_280, %c2_281, %c5_282, %c0_283, %c0_284] : memref<1x3x9x8x128xf32, #tpu.memory_space<vmem>>, vector<1x1x1x8x128xf32>
    %290 = vector.shape_cast %289 : vector<1x1x1x8x128xf32> to vector<8x128xf32>
    %cst_285 = arith.constant 0.000000e+00 : f32
    %291 = vector.broadcast %cst_285 : f32 to vector<8x128xf32>
    %c0_286 = arith.constant 0 : index
    %c2_287 = arith.constant 2 : index
    %c6_288 = arith.constant 6 : index
    %c0_289 = arith.constant 0 : index
    %c0_290 = arith.constant 0 : index
    %292 = vector.load %arg2[%c0_286, %c2_287, %c6_288, %c0_289, %c0_290] : memref<1x3x9x8x128xf32, #tpu.memory_space<vmem>>, vector<1x1x1x8x128xf32>
    %293 = vector.shape_cast %292 : vector<1x1x1x8x128xf32> to vector<8x128xf32>
    %294 = arith.cmpf ogt, %293, %290 : vector<8x128xf32>
    %cst_291 = arith.constant 1.000000e+00 : f32
    %295 = vector.broadcast %cst_291 : f32 to vector<8x128xf32>
    %296 = arith.select %294, %295, %291 : vector<8x128xi1>, vector<8x128xf32>
    %297 = arith.maximumf %290, %293 : vector<8x128xf32>
    %c0_292 = arith.constant 0 : index
    %c2_293 = arith.constant 2 : index
    %c7_294 = arith.constant 7 : index
    %c0_295 = arith.constant 0 : index
    %c0_296 = arith.constant 0 : index
    %298 = vector.load %arg2[%c0_292, %c2_293, %c7_294, %c0_295, %c0_296] : memref<1x3x9x8x128xf32, #tpu.memory_space<vmem>>, vector<1x1x1x8x128xf32>
    %299 = vector.shape_cast %298 : vector<1x1x1x8x128xf32> to vector<8x128xf32>
    %cst_297 = arith.constant 2.000000e+00 : f32
    %300 = vector.broadcast %cst_297 : f32 to vector<8x128xf32>
    %c0_298 = arith.constant 0 : index
    %c2_299 = arith.constant 2 : index
    %c8_300 = arith.constant 8 : index
    %c0_301 = arith.constant 0 : index
    %c0_302 = arith.constant 0 : index
    %301 = vector.load %arg2[%c0_298, %c2_299, %c8_300, %c0_301, %c0_302] : memref<1x3x9x8x128xf32, #tpu.memory_space<vmem>>, vector<1x1x1x8x128xf32>
    %302 = vector.shape_cast %301 : vector<1x1x1x8x128xf32> to vector<8x128xf32>
    %303 = arith.cmpf ogt, %302, %299 : vector<8x128xf32>
    %cst_303 = arith.constant 3.000000e+00 : f32
    %304 = vector.broadcast %cst_303 : f32 to vector<8x128xf32>
    %305 = arith.select %303, %304, %300 : vector<8x128xi1>, vector<8x128xf32>
    %306 = arith.maximumf %299, %302 : vector<8x128xf32>
    %307 = arith.cmpf ogt, %306, %297 : vector<8x128xf32>
    %308 = arith.select %307, %305, %296 : vector<8x128xi1>, vector<8x128xf32>
    %c0_304 = arith.constant 0 : index
    %c2_305 = arith.constant 2 : index
    %c5_306 = arith.constant 5 : index
    %c0_307 = arith.constant 0 : index
    %c0_308 = arith.constant 0 : index
    %309 = vector.load %arg3[%c0_304, %c2_305, %c5_306, %c0_307, %c0_308] : memref<1x3x6x8x128xf32, #tpu.memory_space<vmem>>, vector<1x1x1x8x128xf32>
    %310 = vector.shape_cast %309 : vector<1x1x1x8x128xf32> to vector<8x128xf32>
    %311 = vector.shape_cast %308 : vector<8x128xf32> to vector<1x1x1x8x128xf32>
    tpu.vector_store %arg3[%c0_304, %c2_305, %c5_306, %c0_307, %c0_308], %311 {strides = array<i32>} : memref<1x3x6x8x128xf32, #tpu.memory_space<vmem>>, vector<1x1x1x8x128xf32>,
    return
  }
  func.func @transform_0(%arg0: i32, %arg1: i32) -> (i32, i32, i32, i32, i32) {
    %c0_i32 = arith.constant 0 : i32
    %c0_i32_0 = arith.constant 0 : i32
    %c0_i32_1 = arith.constant 0 : i32
    %c0_i32_2 = arith.constant 0 : i32
    return %arg0, %c0_i32, %c0_i32_0, %arg1, %c0_i32_1 : i32, i32, i32, i32, i32
  }
  func.func @transform_1(%arg0: i32, %arg1: i32) -> (i32, i32, i32, i32, i32) {
    %c0_i32 = arith.constant 0 : i32
    %c0_i32_0 = arith.constant 0 : i32
    %c0_i32_1 = arith.constant 0 : i32
    %c0_i32_2 = arith.constant 0 : i32
    return %arg0, %c0_i32, %c0_i32_0, %arg1, %c0_i32_1 : i32, i32, i32, i32, i32
  }
}

</mosaic_0001>

<llo_original>
// kernel: tpu_custom_call.1
$region0: #{tpu_custom_call.1}
  #allocation0 [shape = 'u32[]', space=smem, size = 0x4, offset = 0x4, fixed_abs, tag = 'smem constant byte address 0x4 - core index']
  #allocation1 [shape = 'u32[144,128]{1,0:T(1,128)}', space=vmem, size = 0x12000, scoped, tag = 'internal scratch']
  %s0 = inlined_call_operand.hbm [shape: f32[1,3,9,24,128], index: 0, kind: input, shape index: {}]
  %s1 = inlined_call_operand.hbm [shape: f32[1,3,6,24,128], index: 1, kind: output, shape index: {}]
  %s2 = sld [smem:[#allocation0]]
  $region41: #{tpu_custom_call.1} parent=0
    _
  %s4 = ssub.s32 1, %s2
  %s5 = scalar_select 0, %s4, %s2
  $region1: #{tpu_custom_call.1} parent=0
    #allocation2 [shape = 'u8[221184]{0}', space=vmem, size = 0x36000, scoped, tag = 'input window, operand 0']
    #allocation3 [shape = 's32[2]{0}', space=sflag, size = 0x8, scoped, tag = 'scoped memory for tpu_custom_call.1']
    #allocation4 [shape = 's32[2]{0}', space=sflag, size = 0x8, scoped, tag = 'scoped memory for tpu_custom_call.1']
    #allocation5 [shape = 'u8[147456]{0}', space=vmem, size = 0x24000, scoped, tag = 'output window, operand 0']
    %6 = vsyncpa [#allocation3], 0
    %s7 = scalar_lea.sflag [#allocation3], 1
    %8 = vsyncpa %s7, 0
    %9 = vsyncpa [#allocation4], 0
    %s10 = scalar_lea.sflag [#allocation4], 1
    %11 = vsyncpa %s10, 0
    loop: start=0, step=1, limit=5
    $region2: #{tpu_custom_call.1} parent=1 // loop_pre_header
      _
    $region3: #{tpu_custom_call.1} parent=1 // loop_header
      %s13 = sphi 0, %s17
      %p14 = scmp.ge.s32.totalorder %s13, 5
      %s20 = sphi 0, %s32
      %s21 = sphi 0, %s28
      %s22 = sphi 0, %s20
      %s23 = sphi 0, %s21
      %s24 = sphi 0, %s22
      %s25 = sphi 0, %s23
      %s37 = sphi 0, %s39
      %s40 = sphi 0, %s37
      %s41 = sphi 0, %s40
      %s57 = sphi 0, %s41
      %s65 = sphi 0, %s67
      %s68 = sphi 0, %s65
      %s69 = sphi 0, %s68
      %s85 = sphi 0, %s69
    $region4: #{tpu_custom_call.1} parent=1 // loop_header_branch
      %16 = sbr.rel (%p14) target = $region8
    $region5: #{tpu_custom_call.1} parent=1 // loop_body
      %s18 = ssub.s32 %s13, 1
      %s19 = ssub.s32 %s13, 2
      %s26 = sadd.s32 1, %s21
      %p27 = scmp.ge.s32.totalorder %s26, 3
      %s28 = scalar_select %p27, 0, %s26
      %s29 = sadd.s32 1, %s20
      %s30 = scalar_select %p27, %s29, %s20
      %p31 = scmp.ge.s32.totalorder %s30, 1
      %s32 = scalar_select %p31, 0, %s30
      %s33 = ssub.s32 %s20, %s32
      %s34 = ssub.s32 %s21, %s28
      %s35 = sor.u32 %s33, %s34
      %p36 = scmp.eq.s32.totalorder %s35, 0
      %s38 = sadd.s32 %s37, 1
      %s39 = scalar_select %p36, %s37, %s38
      %p42 = pneg %p36
      %p43 = scmp.eq.s32.totalorder %s13, 2
      %p44 = por %p42, %p43
      %p45 = scmp.ne.s32.totalorder %s37, %s40
      %p46 = scmp.eq.s32.totalorder %s13, 0
      %p47 = por %p45, %p46
      %p48 = scmp.ne.s32.totalorder %s37, %s40
      %p49 = scmp.eq.s32.totalorder %s18, 2
      %p50 = por %p48, %p49
      %p51 = scmp.ne.s32.totalorder %s40, %s41
      %p52 = scmp.eq.s32.totalorder %s18, 0
      %p53 = por %p51, %p52
      %p54 = scmp.ne.s32.totalorder %s40, %s41
      %p55 = scmp.eq.s32.totalorder %s19, 2
      %p56 = por %p54, %p55
      %p58 = scmp.ne.s32.totalorder %s41, %s57
      %p59 = scmp.eq.s32.totalorder %s19, 0
      %p60 = por %p58, %p59
      %s61 = ssub.s32 %s20, %s32
      %s62 = ssub.s32 %s21, %s28
      %s63 = sor.u32 %s61, %s62
      %p64 = scmp.eq.s32.totalorder %s63, 0
      %s66 = sadd.s32 %s65, 1
      %s67 = scalar_select %p64, %s65, %s66
      %p70 = pneg %p64
      %p71 = scmp.eq.s32.totalorder %s13, 2
      %p72 = por %p70, %p71
      %p73 = scmp.ne.s32.totalorder %s65, %s68
      %p74 = scmp.eq.s32.totalorder %s13, 0
      %p75 = por %p73, %p74
      %p76 = scmp.ne.s32.totalorder %s65, %s68
      %p77 = scmp.eq.s32.totalorder %s18, 2
      %p78 = por %p76, %p77
      %p79 = scmp.ne.s32.totalorder %s68, %s69
      %p80 = scmp.eq.s32.totalorder %s18, 0
      %p81 = por %p79, %p80
      %p82 = scmp.ne.s32.totalorder %s68, %s69
      %p83 = scmp.eq.s32.totalorder %s19, 2
      %p84 = por %p82, %p83
      %p86 = scmp.ne.s32.totalorder %s69, %s85
      %p87 = scmp.eq.s32.totalorder %s19, 0
      %p88 = por %p86, %p87
      %p89 = scmp.le.s32.totalorder 1, %s13
      %p90 = scmp.lt.s32.totalorder %s13, 4
      %p91 = pnand %p89, %p90
      %p92 = pneg %p91
      // Predicated region
      $region9: #{tpu_custom_call.1} parent=5 // pred_check
        _
      $region10: #{tpu_custom_call.1} parent=5 // pred_check_branch
        %94 = sbr.rel (%p91) target = $region12
      $region11: #{tpu_custom_call.1} parent=5 // pred_region
        %s95 = ssub.s32 %s13, 1
      $region12: #{tpu_custom_call.1} parent=5 // pred_fallthru
        _
      %p96 = scmp.lt.s32.totalorder %s13, 3
      // Predicated region
      $region13: #{tpu_custom_call.1} parent=5 // pred_check
        %p97 = pneg %p96
      $region14: #{tpu_custom_call.1} parent=5 // pred_check_branch
        %99 = sbr.rel (%p97) target = $region16
      $region15: #{tpu_custom_call.1} parent=5 // pred_region
        // Predicated region
        $region17: #{tpu_custom_call.1} parent=15 // pred_check
          %p100 = pneg %p47
        $region18: #{tpu_custom_call.1} parent=15 // pred_check_branch
          %102 = sbr.rel (%p100) target = $region20
        $region19: #{tpu_custom_call.1} parent=15 // pred_region
          %s103 = sand.u32 %s37, 1
          %s104 = scalar_lea.sflag [#allocation3], %s103
          %s105 = sand.u32 %s37, 1
          %s106 = smul.addr %s105, 216
          %s107 = scalar_lea.vmem [#allocation2], %s106
          %s109 = ssub.s32 3456, 3456
          %110 = vsyncadd %s104, %s109
          %s111 = smul.addr %s20, 81
          %s112 = sadd.s32 %s21, %s111
          %s113 = smul.addr %s112, 128
          %s114 = scalar_lea.hbm %s0, %s113
          %s115 = sshll.u32 %s107, 4
          %s116 = int_to_ptr.vmem [resolvable:$true] %s115
          %121 = dma.hbm_to_vmem [thread:$0]  %s114, 3456, %s116, %s104, 384, 128, 8
        $region20: #{tpu_custom_call.1} parent=15 // pred_fallthru
          _
      $region16: #{tpu_custom_call.1} parent=5 // pred_fallthru
        _
      %p122 = scmp.le.s32.totalorder 1, %s13
      %p123 = scmp.lt.s32.totalorder %s13, 4
      %p124 = pnand %p122, %p123
      %p125 = pneg %p124
      // Predicated region
      $region21: #{tpu_custom_call.1} parent=5 // pred_check
        _
      $region22: #{tpu_custom_call.1} parent=5 // pred_check_branch
        %127 = sbr.rel (%p124) target = $region24
      $region23: #{tpu_custom_call.1} parent=5 // pred_region
        %s128 = ssub.s32 %s13, 1
        %s129 = sand.u32 %s40, 1
        %s130 = scalar_lea.sflag [#allocation3], %s129
        %s131 = sand.u32 %s40, 1
        %s132 = smul.addr %s131, 216
        %s133 = scalar_lea.vmem [#allocation2], %s132
        // Predicated region
        $region25: #{tpu_custom_call.1} parent=23 // pred_check
          %p134 = pneg %p53
        $region26: #{tpu_custom_call.1} parent=23 // pred_check_branch
          %136 = sbr.rel (%p134) target = $region28
        $region27: #{tpu_custom_call.1} parent=23 // pred_region
          %137 = dma.done %s130, 3456
        $region28: #{tpu_custom_call.1} parent=23 // pred_fallthru
          _
        %s138 = sand.u32 %s40, 1
        %s139 = scalar_lea.sflag [#allocation3], %s138
        %s140 = sand.u32 %s40, 1
        %s141 = smul.addr %s140, 216
        %s142 = scalar_lea.vmem [#allocation2], %s141
        %p143 = pneg %p53
        %p144 = pneg %p50
        %p145 = pneg %p81
        %p146 = pneg %p78
        %s147 = sand.u32 %s68, 1
        %s148 = scalar_lea.sflag [#allocation4], %s147
        %s149 = sand.u32 %s68, 1
        %s150 = smul.addr %s149, 144
        %s151 = scalar_lea.vmem [#allocation5], %s150
        %s152 = smul.u32 %s23, 1024
        %p153 = scmp.ge.s32.totalorder %s23, 1
        %s154 = ssub.s32 %s23, 1
        %s155 = smul.u32 %s154, 1024
        %s156 = scalar_select %p153, %s155, %s152
        %p157 = scmp.ge.s32.totalorder %s23, 2
        %s158 = ssub.s32 %s23, 2
        %s159 = smul.u32 %s158, 1024
        %s160 = scalar_select %p157, %s159, %s156
        %s161 = scalar_select %p153, 4.0, 8.0
        %s162 = scalar_select %p157, 2.0, %s161
        %s163 = scalar_select %p153, 0.25, 0.125
        %s164 = scalar_select %p157, 0.5, %s163
        %s165 = scalar_select %p153, 16.0, 8.0
        %s166 = scalar_select %p157, 32.0, %s165
        %v167 = vlaneseq
        %v168 = vshrl.u32 %v167, 7
        %v169 = vlaneseq
        %v170 = vand.u32 %v169, 127
        %v171 = vmul.u32 %v168, 128
        %v172 = vadd.s32 %v171, %v170
        %v173 = vstv %s160
        %v174 = vadd.s32 %v172, %v173
        %v175 = vcvt.s32.f32 %v174
        %v176 = vadd.f32 %v175, 0.5
        %v177 = vstv %s164
        %v178 = vmul.f32 %v176, %v177
        %v179 = vfloor.f32 %v178
        %v180 = vstv %s162
        %v181 = vmul.f32 %v179, %v180
        %v182 = vsub.f32 %v175, %v181
        %v183 = vstv %s166
        %v184 = vmul.f32 %v182, %v183
        %v185 = vmul.f32 %v179, %v183
        %s186 = scalar_select %p153, 16.0, 4.0
        %s187 = scalar_select %p157, 40.0, %s186
        %s188 = scalar_select %p153, 24.0, 6.0
        %s189 = scalar_select %p157, 48.0, %s188
        %v190 = vld [vmem:[%s133] sm:$0xff]
        %s191 = scalar_lea.vmem %s133, 8 [#allocation2]
        %v192 = vld [vmem:[%s191] sm:$0xff]
        %s193 = scalar_lea.vmem %s133, 16 [#allocation2]
        %v194 = vld [vmem:[%s193] sm:$0xff]
        %s195 = scalar_lea.vmem %s133, 24 [#allocation2]
        %v196 = vld [vmem:[%s195] sm:$0xff]
        %s197 = scalar_lea.vmem %s133, 32 [#allocation2]
        %v198 = vld [vmem:[%s197] sm:$0xff]
        %v199 = vmul.f32 %v190, 0.5
        %v200 = vtanh.pop %v199
        %v201 = vmul.f32 %v200, 0.5
        %v202 = vadd.f32 %v201, 0.5
        %v203 = vmul.f32 %v202, %v183
        %v204 = vadd.f32 %v203, %v184
        %205 = vst [vmem:[%s151] sm:$0xff] %v204
        %v206 = vmul.f32 %v192, 0.5
        %v207 = vtanh.pop %v206
        %v208 = vmul.f32 %v207, 0.5
        %v209 = vadd.f32 %v208, 0.5
        %v210 = vmul.f32 %v209, %v183
        %v211 = vadd.f32 %v210, %v185
        %s212 = scalar_lea.vmem %s151, 8 [#allocation5]
        %213 = vst [vmem:[%s212] sm:$0xff] %v211
        %v214 = vmul.f32 %v194, 1.442695
        %v215 = vpow.pop %v214
        %v216 = vstv %s187
        %v217 = vmul.f32 %v215, %v216
        %s218 = scalar_lea.vmem %s151, 16 [#allocation5]
        %219 = vst [vmem:[%s218] sm:$0xff] %v217
        %v220 = vmul.f32 %v196, 1.442695
        %v221 = vpow.pop %v220
        %v222 = vstv %s189
        %v223 = vmul.f32 %v221, %v222
        %s224 = scalar_lea.vmem %s151, 24 [#allocation5]
        %225 = vst [vmem:[%s224] sm:$0xff] %v223
        %v226 = vmul.f32 %v198, 0.5
        %v227 = vtanh.pop %v226
        %v228 = vmul.f32 %v227, 0.5
        %v229 = vadd.f32 %v228, 0.5
        %s230 = scalar_lea.vmem %s151, 32 [#allocation5]
        %231 = vst [vmem:[%s230] sm:$0xff] %v229
        %s232 = scalar_lea.vmem %s133, 40 [#allocation2]
        %v233 = vld [vmem:[%s232] sm:$0xff]
        %s234 = scalar_lea.vmem %s133, 48 [#allocation2]
        %v235 = vld [vmem:[%s234] sm:$0xff]
        %vm236 = vcmp.gt.f32.partialorder %v235, %v233
        %v237 = vsel %vm236, 1.0, 0.0
        %v238 = vmax.f32 %v233, %v235
        %s239 = scalar_lea.vmem %s133, 56 [#allocation2]
        %v240 = vld [vmem:[%s239] sm:$0xff]
        %s241 = scalar_lea.vmem %s133, 64 [#allocation2]
        %v242 = vld [vmem:[%s241] sm:$0xff]
        %vm243 = vcmp.gt.f32.partialorder %v242, %v240
        %v244 = vsel %vm243, 3.0, 2.0
        %v245 = vmax.f32 %v240, %v242
        %vm246 = vcmp.gt.f32.partialorder %v245, %v238
        %v247 = vsel %vm246, %v244, %v237
        %s248 = scalar_lea.vmem %s151, 40 [#allocation5]
        %249 = vst [vmem:[%s248] sm:$0xff] %v247
        %s250 = scalar_select %p153, 24.0, 8.0
        %s251 = scalar_select %p157, 48.0, %s250
        %s252 = scalar_select %p153, 32.0, 10.0
        %s253 = scalar_select %p157, 56.0, %s252
        %s254 = scalar_lea.vmem %s133, 72 [#allocation2]
        %v255 = vld [vmem:[%s254] sm:$0xff]
        %s256 = scalar_lea.vmem %s133, 80 [#allocation2]
        %v257 = vld [vmem:[%s256] sm:$0xff]
        %s258 = scalar_lea.vmem %s133, 88 [#allocation2]
        %v259 = vld [vmem:[%s258] sm:$0xff]
        %s260 = scalar_lea.vmem %s133, 96 [#allocation2]
        %v261 = vld [vmem:[%s260] sm:$0xff]
        %s262 = scalar_lea.vmem %s133, 104 [#allocation2]
        %v263 = vld [vmem:[%s262] sm:$0xff]
        %v264 = vmul.f32 %v255, 0.5
        %v265 = vtanh.pop %v264
        %v266 = vmul.f32 %v265, 0.5
        %v267 = vadd.f32 %v266, 0.5
        %v268 = vmul.f32 %v267, %v183
        %v269 = vadd.f32 %v268, %v184
        %s270 = scalar_lea.vmem %s151, 48 [#allocation5]
        %271 = vst [vmem:[%s270] sm:$0xff] %v269
        %v272 = vmul.f32 %v257, 0.5
        %v273 = vtanh.pop %v272
        %v274 = vmul.f32 %v273, 0.5
        %v275 = vadd.f32 %v274, 0.5
        %v276 = vmul.f32 %v275, %v183
        %v277 = vadd.f32 %v276, %v185
        %s278 = scalar_lea.vmem %s151, 56 [#allocation5]
        %279 = vst [vmem:[%s278] sm:$0xff] %v277
        %v280 = vmul.f32 %v259, 1.442695
        %v281 = vpow.pop %v280
        %v282 = vstv %s251
        %v283 = vmul.f32 %v281, %v282
        %s284 = scalar_lea.vmem %s151, 64 [#allocation5]
        %285 = vst [vmem:[%s284] sm:$0xff] %v283
        %v286 = vmul.f32 %v261, 1.442695
        %v287 = vpow.pop %v286
        %v288 = vstv %s253
        %v289 = vmul.f32 %v287, %v288
        %s290 = scalar_lea.vmem %s151, 72 [#allocation5]
        %291 = vst [vmem:[%s290] sm:$0xff] %v289
        %v292 = vmul.f32 %v263, 0.5
        %v293 = vtanh.pop %v292
        %v294 = vmul.f32 %v293, 0.5
        %v295 = vadd.f32 %v294, 0.5
        %s296 = scalar_lea.vmem %s151, 80 [#allocation5]
        %297 = vst [vmem:[%s296] sm:$0xff] %v295
        %s298 = scalar_lea.vmem %s133, 112 [#allocation2]
        %v299 = vld [vmem:[%s298] sm:$0xff]
        %s300 = scalar_lea.vmem %s133, 120 [#allocation2]
        %v301 = vld [vmem:[%s300] sm:$0xff]
        %vm302 = vcmp.gt.f32.partialorder %v301, %v299
        %v303 = vsel %vm302, 1.0, 0.0
        %v304 = vmax.f32 %v299, %v301
        %s305 = scalar_lea.vmem %s133, 128 [#allocation2]
        %v306 = vld [vmem:[%s305] sm:$0xff]
        %s307 = scalar_lea.vmem %s133, 136 [#allocation2]
        %v308 = vld [vmem:[%s307] sm:$0xff]
        %vm309 = vcmp.gt.f32.partialorder %v308, %v306
        %v310 = vsel %vm309, 3.0, 2.0
        %v311 = vmax.f32 %v306, %v308
        %vm312 = vcmp.gt.f32.partialorder %v311, %v304
        %v313 = vsel %vm312, %v310, %v303
        %s314 = scalar_lea.vmem %s151, 88 [#allocation5]
        %315 = vst [vmem:[%s314] sm:$0xff] %v313
        %s316 = scalar_select %p153, 32.0, 12.0
        %s317 = scalar_select %p157, 56.0, %s316
        %s318 = scalar_select %p153, 40.0, 16.0
        %s319 = scalar_select %p157, 60.0, %s318
        %s320 = scalar_lea.vmem %s133, 144 [#allocation2]
        %v321 = vld [vmem:[%s320] sm:$0xff]
        %s322 = scalar_lea.vmem %s133, 152 [#allocation2]
        %v323 = vld [vmem:[%s322] sm:$0xff]
        %s324 = scalar_lea.vmem %s133, 160 [#allocation2]
        %v325 = vld [vmem:[%s324] sm:$0xff]
        %s326 = scalar_lea.vmem %s133, 168 [#allocation2]
        %v327 = vld [vmem:[%s326] sm:$0xff]
        %s328 = scalar_lea.vmem %s133, 176 [#allocation2]
        %v329 = vld [vmem:[%s328] sm:$0xff]
        %v330 = vmul.f32 %v321, 0.5
        %v331 = vtanh.pop %v330
        %v332 = vmul.f32 %v331, 0.5
        %v333 = vadd.f32 %v332, 0.5
        %v334 = vmul.f32 %v333, %v183
        %v335 = vadd.f32 %v334, %v184
        %s336 = scalar_lea.vmem %s151, 96 [#allocation5]
        %337 = vst [vmem:[%s336] sm:$0xff] %v335
        %v338 = vmul.f32 %v323, 0.5
        %v339 = vtanh.pop %v338
        %v340 = vmul.f32 %v339, 0.5
        %v341 = vadd.f32 %v340, 0.5
        %v342 = vmul.f32 %v341, %v183
        %v343 = vadd.f32 %v342, %v185
        %s344 = scalar_lea.vmem %s151, 104 [#allocation5]
        %345 = vst [vmem:[%s344] sm:$0xff] %v343
        %v346 = vmul.f32 %v325, 1.442695
        %v347 = vpow.pop %v346
        %v348 = vstv %s317
        %v349 = vmul.f32 %v347, %v348
        %s350 = scalar_lea.vmem %s151, 112 [#allocation5]
        %351 = vst [vmem:[%s350] sm:$0xff] %v349
        %v352 = vmul.f32 %v327, 1.442695
        %v353 = vpow.pop %v352
        %v354 = vstv %s319
        %v355 = vmul.f32 %v353, %v354
        %s356 = scalar_lea.vmem %s151, 120 [#allocation5]
        %357 = vst [vmem:[%s356] sm:$0xff] %v355
        %v358 = vmul.f32 %v329, 0.5
        %v359 = vtanh.pop %v358
        %v360 = vmul.f32 %v359, 0.5
        %v361 = vadd.f32 %v360, 0.5
        %s362 = scalar_lea.vmem %s151, 128 [#allocation5]
        %363 = vst [vmem:[%s362] sm:$0xff] %v361
        %s364 = scalar_lea.vmem %s133, 184 [#allocation2]
        %v365 = vld [vmem:[%s364] sm:$0xff]
        %s366 = scalar_lea.vmem %s133, 192 [#allocation2]
        %v367 = vld [vmem:[%s366] sm:$0xff]
        %vm368 = vcmp.gt.f32.partialorder %v367, %v365
        %v369 = vsel %vm368, 1.0, 0.0
        %v370 = vmax.f32 %v365, %v367
        %s371 = scalar_lea.vmem %s133, 200 [#allocation2]
        %v372 = vld [vmem:[%s371] sm:$0xff]
        %s373 = scalar_lea.vmem %s133, 208 [#allocation2]
        %v374 = vld [vmem:[%s373] sm:$0xff]
        %vm375 = vcmp.gt.f32.partialorder %v374, %v372
        %v376 = vsel %vm375, 3.0, 2.0
        %v377 = vmax.f32 %v372, %v374
        %vm378 = vcmp.gt.f32.partialorder %v377, %v370
        %v379 = vsel %vm378, %v376, %v369
        %s380 = scalar_lea.vmem %s151, 136 [#allocation5]
        %381 = vst [vmem:[%s380] sm:$0xff] %v379
        %s382 = sand.u32 %s68, 1
        %s383 = scalar_lea.sflag [#allocation4], %s382
        %s384 = sand.u32 %s68, 1
        %s385 = smul.addr %s384, 144
        %s386 = scalar_lea.vmem [#allocation5], %s385
        // Predicated region
        $region29: #{tpu_custom_call.1} parent=23 // pred_check
          %p387 = pneg %p78
        $region30: #{tpu_custom_call.1} parent=23 // pred_check_branch
          %389 = sbr.rel (%p387) target = $region32
        $region31: #{tpu_custom_call.1} parent=23 // pred_region
          %s391 = ssub.s32 2304, 2304
          %392 = vsyncadd %s383, %s391
          %s393 = smul.addr %s22, 54
          %s394 = sadd.s32 %s23, %s393
          %s395 = smul.addr %s394, 128
          %s396 = scalar_lea.hbm %s1, %s395
          %s397 = sshll.u32 %s386, 4
          %s398 = int_to_ptr.vmem [resolvable:$true] %s397
          %403 = dma.vmem_to_hbm [thread:$0]  %s398, 2304, %s396, %s383, 128, 384, 8
        $region32: #{tpu_custom_call.1} parent=23 // pred_fallthru
          _
      $region24: #{tpu_custom_call.1} parent=5 // pred_fallthru
        _
      %p404 = scmp.le.s32.totalorder 2, %s13
      // Predicated region
      $region33: #{tpu_custom_call.1} parent=5 // pred_check
        %p405 = pneg %p404
      $region34: #{tpu_custom_call.1} parent=5 // pred_check_branch
        %407 = sbr.rel (%p405) target = $region36
      $region35: #{tpu_custom_call.1} parent=5 // pred_region
        %s408 = ssub.s32 %s13, 2
        // Predicated region
        $region37: #{tpu_custom_call.1} parent=35 // pred_check
          %p409 = pneg %p84
        $region38: #{tpu_custom_call.1} parent=35 // pred_check_branch
          %411 = sbr.rel (%p409) target = $region40
        $region39: #{tpu_custom_call.1} parent=35 // pred_region
          %s412 = sand.u32 %s69, 1
          %s413 = scalar_lea.sflag [#allocation4], %s412
          %s414 = sand.u32 %s69, 1
          %s415 = smul.addr %s414, 144
          %s416 = scalar_lea.vmem [#allocation5], %s415
          %417 = dma.done %s413, 2304
        $region40: #{tpu_custom_call.1} parent=35 // pred_fallthru
          _
      $region36: #{tpu_custom_call.1} parent=5 // pred_fallthru
        _
    $region6: #{tpu_custom_call.1} parent=1 // loop_footer
      %s17 = sadd.s32 1, %s13
    $region7: #{tpu_custom_call.1} parent=1 // loop_footer_branch
      %12 = sbr.rel target = $region3
    $region8: #{tpu_custom_call.1} parent=1 // loop_exit
      _
    %418 = vsyncpa [#allocation3], 1
    %s419 = scalar_lea.sflag [#allocation3], 1
    %420 = vsyncpa %s419, 1
    %421 = vsyncpa [#allocation4], 1
    %s422 = scalar_lea.sflag [#allocation4], 1
    %423 = vsyncpa %s422, 1

</llo_original>
